<compile_context>
chip_gen: v5e
topology: v5e:2x2
jax: 0.10.0
libtpu: 0.0.40
codegen_flags: <defaults>
</compile_context>

<pallas_src>
import jax
import jax.numpy as jnp
from jax.experimental import pallas as pl
from jax.experimental.pallas import tpu as pltpu


_LANE = 128
_TARGET_BLOCK_BYTES = 2 * 1024 * 1024   # ~2 MiB of x per grid step
_VMEM_LIMIT_BYTES = 32 * 1024 * 1024    # explicit limit, valid on v5e/v6e/v7x


def _pool_kernel(x_ref, sum_ref, acc_ref):
    """Per-channel spatial sums.  x block (TB, C, THW) -> sums (TB, C, 1)."""
    t = pl.program_id(1)

    @pl.when(t == 0)
    def _():
        acc_ref[...] = jnp.zeros_like(acc_ref)

    # Lane (XLU) reduction; accumulate in f32 across spatial tiles.
    acc_ref[...] += jnp.sum(x_ref[...].astype(jnp.float32), axis=-1, keepdims=True)

    @pl.when(t == pl.num_programs(1) - 1)
    def _():
        sum_ref[...] = acc_ref[...]


def _scale_kernel(x_ref, y_ref, o_ref):
    """out = x * y, y is the (TB, C, 1) channel gate broadcast across lanes."""
    o_ref[...] = x_ref[...] * y_ref[...]


def _choose_tiles(B, C, HW_pad, itemsize):
    """Pick (TB, THW): ~2 MiB per x block, THW a multiple of 128."""
    bytes_per_image = C * HW_pad * itemsize
    if bytes_per_image >= _TARGET_BLOCK_BYTES:
        # Large image: one batch element per step, tile the spatial axis.
        thw = (_TARGET_BLOCK_BYTES // (C * itemsize)) // _LANE * _LANE
        thw = int(max(_LANE, min(thw, HW_pad)))
        tb = 1
    else:
        # Small image: whole image per step, fold several batch elements.
        thw = HW_pad
        tb = int(max(1, min(B, _TARGET_BLOCK_BYTES // bytes_per_image)))
    return tb, thw


def cse_forward(x, w1, b1, w2, b2):
    """x: (B, C, H, W).  w1: (C//r, C), b1: (C//r,), w2: (C, C//r), b2: (C,)."""
    B, C, H, W = x.shape
    HW = H * W
    itemsize = jnp.dtype(x.dtype).itemsize

    # Lane-dense padding of the spatial axis, then tile selection.
    HW_pad = ((HW + _LANE - 1) // _LANE) * _LANE
    tb, thw = _choose_tiles(B, C, HW_pad, itemsize)
    HW_pad = ((HW_pad + thw - 1) // thw) * thw      # multiple of THW
    B_pad = ((B + tb - 1) // tb) * tb               # multiple of TB

    xr = x.reshape(B, C, HW)
    xp = jnp.pad(xr, ((0, B_pad - B), (0, 0), (0, HW_pad - HW)))

    n_b = B_pad // tb
    n_t = HW_pad // thw

    # ---- Pallas pass 1: tiled spatial sum-reduction -> (B_pad, C, 1) f32 ----
    sums = pl.pallas_call(
        _pool_kernel,
        out_shape=jax.ShapeDtypeStruct((B_pad, C, 1), jnp.float32),
        grid_spec=pltpu.PrefetchScalarGridSpec(
            num_scalar_prefetch=0,
            grid=(n_b, n_t),
            in_specs=[pl.BlockSpec((tb, C, thw), lambda b, t: (b, 0, t))],
            out_specs=pl.BlockSpec((tb, C, 1), lambda b, t: (b, 0, 0)),
            scratch_shapes=[pltpu.VMEM((tb, C, 1), jnp.float32)],
        ),
        compiler_params=pltpu.CompilerParams(
            dimension_semantics=("parallel", "arbitrary"),
            vmem_limit_bytes=_VMEM_LIMIT_BYTES,
        ),
    )(xp)

    # ---- Gate (tiny (B, C) math): plain XLA, as recommended by the review ----
    pooled = sums[:, :, 0] / float(HW)                       # zero-pad cols add 0
    h = jnp.maximum(pooled @ w1.T + b1, 0.0)                 # (B_pad, C//r)
    y = jax.nn.sigmoid(h @ w2.T + b2)                        # (B_pad, C)
    y = y.astype(x.dtype)[:, :, None]                        # (B_pad, C, 1)

    # ---- Pallas pass 2: tiled gated multiply out = x * y ----
    out = pl.pallas_call(
        _scale_kernel,
        out_shape=jax.ShapeDtypeStruct((B_pad, C, HW_pad), x.dtype),
        grid_spec=pltpu.PrefetchScalarGridSpec(
            num_scalar_prefetch=0,
            grid=(n_b, n_t),
            in_specs=[
                pl.BlockSpec((tb, C, thw), lambda b, t: (b, 0, t)),
                pl.BlockSpec((tb, C, 1), lambda b, t: (b, 0, 0)),
            ],
            out_specs=pl.BlockSpec((tb, C, thw), lambda b, t: (b, 0, t)),
        ),
        compiler_params=pltpu.CompilerParams(
            dimension_semantics=("parallel", "parallel"),
            vmem_limit_bytes=_VMEM_LIMIT_BYTES,
        ),
    )(xp, y)

    return out[:B, :, :HW].reshape(B, C, H, W)


def cse_reference(x, w1, b1, w2, b2):
    """Pure-JAX reference mirroring the PyTorch CSE module."""
    pooled = jnp.mean(x, axis=(2, 3))                        # (B, C)
    h = jnp.maximum(pooled @ w1.T + b1, 0.0)                 # (B, C//r)
    y = jax.nn.sigmoid(h @ w2.T + b2)                        # (B, C)
    return x * y[:, :, None, None]


if __name__ == "__main__":
    key = jax.random.PRNGKey(0)
    B, C, H, W = 2, 8, 16, 16
    r = 1                       # CSE's default reduction ratio
    Cr = C // r

    ks = jax.random.split(key, 5)
    x = jax.random.normal(ks[0], (B, C, H, W), dtype=jnp.float32)
    # Parameters with nn.Linear shapes: W1 (Cr, C), b1 (Cr,), W2 (C, Cr), b2 (C,).
    w1 = jax.random.normal(ks[1], (Cr, C), dtype=jnp.float32) * 0.2
    b1 = jax.random.normal(ks[2], (Cr,), dtype=jnp.float32) * 0.1
    w2 = jax.random.normal(ks[3], (C, Cr), dtype=jnp.float32) * 0.2
    b2 = jax.random.normal(ks[4], (C,), dtype=jnp.float32) * 0.1

    out = jax.block_until_ready(cse_forward(x, w1, b1, w2, b2))
    ref = cse_reference(x, w1, b1, w2, b2)

    assert out.shape == (B, C, H, W)
    assert jnp.allclose(out, ref, atol=1e-5, rtol=1e-5), "mismatch vs reference"

    print("KERNEL_OK")
</pallas_src>

<mosaic_0001>
module attributes {stable_mosaic.version = 11 : i64} {
  func.func @_pool_kernel(%arg0: i32, %arg1: i32, %arg2: memref<2x8x256xf32, #tpu.memory_space<vmem>>, %arg3: memref<2x8x1xf32, #tpu.memory_space<vmem>>, %arg4: memref<2x8x1xf32, #tpu.memory_space<vmem>>) attributes {dimension_semantics = [#tpu.dimension_semantics<parallel>, #tpu.dimension_semantics<arbitrary>], iteration_bounds = array<i64: 1, 1>, scalar_prefetch = 0 : i64, scratch_operands = 1 : i64, tpu.core_type = #tpu.core_type<tc>, window_params = [{transform_indices = @transform_0, window_bounds = array<i64: 2, 8, 256>}, {transform_indices = @transform_1, window_bounds = array<i64: 2, 8, 1>}]} {
    %c0_i32 = arith.constant 0 : i32
    %0 = arith.cmpi eq, %arg1, %c0_i32 : i32
    %1 = arith.extui %0 : i1 to i32
    %c0_i32_0 = arith.constant 0 : i32
    %2 = arith.cmpi ne, %1, %c0_i32_0 : i32
    scf.if %2 {
      %cst_11 = arith.constant 0.000000e+00 : f32
      %12 = vector.broadcast %cst_11 : f32 to vector<2x8x1xf32>
      %c0_12 = arith.constant 0 : index
      %c0_13 = arith.constant 0 : index
      %c0_14 = arith.constant 0 : index
      %13 = vector.load %arg4[%c0_12, %c0_13, %c0_14] : memref<2x8x1xf32, #tpu.memory_space<vmem>>, vector<2x8x1xf32>
      tpu.vector_store %arg4[%c0_12, %c0_13, %c0_14], %12 {strides = array<i32>} : memref<2x8x1xf32, #tpu.memory_space<vmem>>, vector<2x8x1xf32>,
    } else {
    }
    %c0 = arith.constant 0 : index
    %c0_1 = arith.constant 0 : index
    %c0_2 = arith.constant 0 : index
    %3 = vector.load %arg4[%c0, %c0_1, %c0_2] : memref<2x8x1xf32, #tpu.memory_space<vmem>>, vector<2x8x1xf32>
    %c0_3 = arith.constant 0 : index
    %c0_4 = arith.constant 0 : index
    %c0_5 = arith.constant 0 : index
    %4 = vector.load %arg2[%c0_3, %c0_4, %c0_5] : memref<2x8x256xf32, #tpu.memory_space<vmem>>, vector<2x8x256xf32>
    %cst = arith.constant dense<0.000000e+00> : vector<2x8xf32>
    %5 = vector.multi_reduction <add>, %4, %cst [2] : vector<2x8x256xf32> to vector<2x8xf32>
    %6 = vector.shape_cast %5 : vector<2x8xf32> to vector<2x8x1xf32>
    %7 = arith.addf %3, %6 : vector<2x8x1xf32>
    %c0_6 = arith.constant 0 : index
    %c0_7 = arith.constant 0 : index
    %c0_8 = arith.constant 0 : index
    %8 = vector.load %arg4[%c0_6, %c0_7, %c0_8] : memref<2x8x1xf32, #tpu.memory_space<vmem>>, vector<2x8x1xf32>
    tpu.vector_store %arg4[%c0_6, %c0_7, %c0_8], %7 {strides = array<i32>} : memref<2x8x1xf32, #tpu.memory_space<vmem>>, vector<2x8x1xf32>,
    %c0_i32_9 = arith.constant 0 : i32
    %9 = arith.cmpi eq, %arg1, %c0_i32_9 : i32
    %10 = arith.extui %9 : i1 to i32
    %c0_i32_10 = arith.constant 0 : i32
    %11 = arith.cmpi ne, %10, %c0_i32_10 : i32
    scf.if %11 {
      %c0_11 = arith.constant 0 : index
      %c0_12 = arith.constant 0 : index
      %c0_13 = arith.constant 0 : index
      %12 = vector.load %arg4[%c0_11, %c0_12, %c0_13] : memref<2x8x1xf32, #tpu.memory_space<vmem>>, vector<2x8x1xf32>
      %c0_14 = arith.constant 0 : index
      %c0_15 = arith.constant 0 : index
      %c0_16 = arith.constant 0 : index
      %13 = vector.load %arg3[%c0_14, %c0_15, %c0_16] : memref<2x8x1xf32, #tpu.memory_space<vmem>>, vector<2x8x1xf32>
      tpu.vector_store %arg3[%c0_14, %c0_15, %c0_16], %12 {strides = array<i32>} : memref<2x8x1xf32, #tpu.memory_space<vmem>>, vector<2x8x1xf32>,
    } else {
    }
    return
  }
  func.func @transform_0(%arg0: i32, %arg1: i32) -> (i32, i32, i32) {
    %c0_i32 = arith.constant 0 : i32
    %c0_i32_0 = arith.constant 0 : i32
    return %arg0, %c0_i32, %arg1 : i32, i32, i32
  }
  func.func @transform_1(%arg0: i32, %arg1: i32) -> (i32, i32, i32) {
    %c0_i32 = arith.constant 0 : i32
    %c0_i32_0 = arith.constant 0 : i32
    %c0_i32_1 = arith.constant 0 : i32
    return %arg0, %c0_i32, %c0_i32_0 : i32, i32, i32
  }
}

</mosaic_0001>

<llo_original>
// kernel: tpu_custom_call.1
$region0: #{tpu_custom_call.1}
  #allocation0 [shape = 'u32[]', space=smem, size = 0x4, offset = 0x4, fixed_abs, tag = 'smem constant byte address 0x4 - core index']
  #allocation1 [shape = 'u32[72,128]{1,0:T(1,128)}', space=vmem, size = 0x9000, scoped, tag = 'internal scratch']
  #allocation2 [shape = 'f32[2,8,1]{2,1,0:T(8,128)}', space=vmem, size = 0x2000, scoped, tag = 'scratch operand']
  %s0 = inlined_call_operand.hbm [shape: f32[2,8,256], index: 0, kind: input, shape index: {}]
  %s1 = inlined_call_operand.vmem [shape: f32[2,8,1], index: 1, kind: output, shape index: {}]
  %s2 = sld [smem:[#allocation0]]
  $region26: #{tpu_custom_call.1} parent=0
    _
  %s4 = ssub.s32 1, %s2
  %s5 = scalar_select 0, %s4, %s2
  $region1: #{tpu_custom_call.1} parent=0
    #allocation3 [shape = 'u8[16384]{0}', space=vmem, size = 0x4000, scoped, tag = 'input window, operand 0, single buffered']
    #allocation4 [shape = 's32[1]{0}', space=sflag, size = 0x4, scoped, tag = 'scoped memory for tpu_custom_call.1']
    %6 = vsyncpa [#allocation4], 0
    // Predicated region
    $region2: #{tpu_custom_call.1} parent=1 // pred_check
      _
    $region3: #{tpu_custom_call.1} parent=1 // pred_check_branch
      %8 = sbr.rel (0) target = $region5
    $region4: #{tpu_custom_call.1} parent=1 // pred_region
      %10 = vsyncadd [#allocation4], 0
      %s11 = sshll.u32 %s0, 4
      %s12 = int_to_ptr.hbm [resolvable:$true] %s11
      %s13 = sshll.u32 [#allocation3], 4
      %s14 = int_to_ptr.vmem [resolvable:$true] %s13
      %19 = dma.hbm_to_vmem [thread:$0]  %s12, 512, %s14, [#allocation4], 256, 256, 16
    $region5: #{tpu_custom_call.1} parent=1 // pred_fallthru
      _
    // Predicated region
    $region6: #{tpu_custom_call.1} parent=1 // pred_check
      _
    $region7: #{tpu_custom_call.1} parent=1 // pred_check_branch
      %21 = sbr.rel (0) target = $region9
    $region8: #{tpu_custom_call.1} parent=1 // pred_region
      %23 = dma.done [#allocation4], 512
    $region9: #{tpu_custom_call.1} parent=1 // pred_fallthru
      _
    %p24 = scmp.eq.s32.totalorder 0, 0
    // Predicated region
    $region10: #{tpu_custom_call.1} parent=1 // pred_check
      %p25 = pneg %p24
    $region11: #{tpu_custom_call.1} parent=1 // pred_check_branch
      %27 = sbr.rel (%p25) target = $region13
    $region12: #{tpu_custom_call.1} parent=1 // pred_region
      %vm28 = vcmask 7168
      %29 = vst.msk [vmem:[#allocation2] sm:$0xff] %vm28, 0.0
      %30 = vst.msk [vmem:[#allocation2 + $0x8] sm:$0xff] %vm28, 0.0
    $region13: #{tpu_custom_call.1} parent=1 // pred_fallthru
      _
    %v31 = vld [vmem:[#allocation2] sm:$0xff]
    %v32 = vld [vmem:[#allocation2 + $0x8] sm:$0xff]
    %v33 = vld [vmem:[#allocation3] sm:$0xff]
    %v34 = vld [vmem:[#allocation3 + $0x8] sm:$0xff]
    %v35 = vld [vmem:[#allocation3 + $0x10] sm:$0xff]
    %v36 = vld [vmem:[#allocation3 + $0x18] sm:$0xff]
    %v37 = vadd.f32 %v33, %v34
    %38 = vadd.xlane.f32.xlu0 %v37
    %v39 = vpop.xlane.xlu0 %38
    %v40 = vadd.f32 %v35, %v36
    %41 = vadd.xlane.f32.xlu0 %v40
    %v42 = vpop.xlane.xlu0 %41
    %v43 = vadd.f32 %v31, %v39
    %v44 = vadd.f32 %v32, %v42
    %vm45 = vcmask 7168
    %46 = vst.msk [vmem:[#allocation2] sm:$0xff] %vm45, %v43
    %47 = vst.msk [vmem:[#allocation2 + $0x8] sm:$0xff] %vm45, %v44
    // Predicated region
    $region14: #{tpu_custom_call.1} parent=1 // pred_check
      %p48 = pneg %p24
    $region15: #{tpu_custom_call.1} parent=1 // pred_check_branch
      %50 = sbr.rel (%p48) target = $region17
    $region16: #{tpu_custom_call.1} parent=1 // pred_region
      %v51 = vld [vmem:[#allocation2] sm:$0xff]
      %v52 = vld [vmem:[#allocation2 + $0x8] sm:$0xff]
      %53 = vst.msk [vmem:[%s1] sm:$0xff] %vm45, %v51
      %54 = vst.msk [vmem:[%s1 + $0x8] sm:$0xff] %vm45, %v52
    $region17: #{tpu_custom_call.1} parent=1 // pred_fallthru
      _
    // Predicated region
    $region18: #{tpu_custom_call.1} parent=1 // pred_check
      _
    $region19: #{tpu_custom_call.1} parent=1 // pred_check_branch
      %56 = sbr.rel (0) target = $region21
    $region20: #{tpu_custom_call.1} parent=1 // pred_region
      _
    $region21: #{tpu_custom_call.1} parent=1 // pred_fallthru
      _
    // Predicated region
    $region22: #{tpu_custom_call.1} parent=1 // pred_check
      _
    $region23: #{tpu_custom_call.1} parent=1 // pred_check_branch
      %58 = sbr.rel (0) target = $region25
    $region24: #{tpu_custom_call.1} parent=1 // pred_region
      _
    $region25: #{tpu_custom_call.1} parent=1 // pred_fallthru
      _
    %59 = vsyncpa [#allocation4], 1

</llo_original>
